<compile_context>
chip_gen: v7x
topology: tpu7x:2x2x1
jax: 0.10.0
libtpu: 0.0.40
codegen_flags: <defaults>
</compile_context>

<pallas_src>
import jax
import jax.numpy as jnp
from jax.experimental import pallas as pl
from jax.experimental.pallas import tpu as pltpu


def _round_up(x, m):
    return ((x + m - 1) // m) * m


def qnet_kernel(x_ref, w1_ref, b1_ref, w2_ref, b2_ref, o_ref):
    x = x_ref[...]                         # (tile_b, S)
    w1 = w1_ref[...]                       # (S, H)
    s = x.shape[1]
    # fc1 as S broadcast-FMAs on the VPU: with K=S=4 the MXU would be >96%
    # idle and we'd pay a push/pop round trip on a latency-bound kernel.
    h = x[:, 0:1] * w1[0:1, :]
    for k in range(1, s):                  # S is static -> unrolled at trace time
        h = h + x[:, k:k + 1] * w1[k:k + 1, :]
    h = jnp.maximum(h + b1_ref[...], 0.0)
    # fc2 on the MXU: (tile_b, H) @ (H, A) -> (tile_b, A), f32 accumulate.
    y = jnp.dot(h, w2_ref[...], preferred_element_type=jnp.float32)
    o_ref[...] = (y + b2_ref[...]).astype(o_ref.dtype)


def qnet_forward(x, w1, b1, w2, b2, *, block_b=1024):
    """y = relu(x @ w1 + b1) @ w2 + b2   (weights stored as (in, out))."""
    B, S = x.shape
    H = w1.shape[1]
    A = w2.shape[1]

    if B <= block_b:
        # DQN-scale batches: one grid step, full-array blocks, zero padding.
        tile_b, Bp = B, B
    else:
        # Replay-buffer-scale batches: tile the batch axis (8-aligned rows).
        tile_b = _round_up(min(block_b, B), 8)
        Bp = _round_up(B, tile_b)
        if Bp != B:
            x = jnp.pad(x, ((0, Bp - B), (0, 0)))
    grid = (Bp // tile_b,)

    cost = pl.CostEstimate(
        flops=2 * Bp * S * H + 2 * Bp * H * A,
        transcendentals=0,
        bytes_accessed=4 * (Bp * S + S * H + H + H * A + A + Bp * A),
    )

    out = pl.pallas_call(
        qnet_kernel,
        out_shape=jax.ShapeDtypeStruct((Bp, A), jnp.float32),
        grid=grid,
        in_specs=[
            # x: one batch tile per grid step (pipelined HBM->VMEM).
            pl.BlockSpec((tile_b, S), lambda i: (i, 0)),
            # Weights / biases: constant index_map -> resident in VMEM.
            pl.BlockSpec((S, H), lambda i: (0, 0)),
            pl.BlockSpec((1, H), lambda i: (0, 0)),
            pl.BlockSpec((H, A), lambda i: (0, 0)),
            pl.BlockSpec((1, A), lambda i: (0, 0)),
        ],
        # Narrow (tile_b, A) output: no lane padding, no post-slice pass.
        out_specs=pl.BlockSpec((tile_b, A), lambda i: (i, 0)),
        compiler_params=pltpu.CompilerParams(
            # Only engages v7x's second TensorCore when the grid has >=2 steps
            # (large-batch path); harmless for grid=(1,).
            dimension_semantics=("parallel",),
        ),
        cost_estimate=cost,
    )(x, w1, b1, w2, b2)

    return out[:B] if Bp != B else out


def init_params(key, state_dim, hidden_dim, action_dim):
    # Deterministic synthetic init (uniform, matching nn.Linear's fan-in bound).
    k1, k2, k3, k4 = jax.random.split(key, 4)
    bound1 = 1.0 / jnp.sqrt(state_dim)
    bound2 = 1.0 / jnp.sqrt(hidden_dim)
    w1 = jax.random.uniform(k1, (state_dim, hidden_dim), jnp.float32, -bound1, bound1)
    b1 = jax.random.uniform(k2, (1, hidden_dim), jnp.float32, -bound1, bound1)
    w2 = jax.random.uniform(k3, (hidden_dim, action_dim), jnp.float32, -bound2, bound2)
    b2 = jax.random.uniform(k4, (1, action_dim), jnp.float32, -bound2, bound2)
    return w1, b1, w2, b2


if __name__ == "__main__":
    # CartPole-v0: state_dim=4, action_dim=2; hidden_dim=128 per the module.
    state_dim, hidden_dim, action_dim = 4, 128, 2

    key = jax.random.PRNGKey(0)
    kx, kp, kx2 = jax.random.split(key, 3)
    w1, b1, w2, b2 = init_params(kp, state_dim, hidden_dim, action_dim)

    def ref_fn(xx):
        return jnp.maximum(xx @ w1 + b1, 0.0) @ w2 + b2

    # 1) DQN minibatch: single grid step, no padding anywhere.
    batch = 64
    x = jax.random.normal(kx, (batch, state_dim), dtype=jnp.float32)
    out = jax.block_until_ready(qnet_forward(x, w1, b1, w2, b2))
    assert out.shape == (batch, action_dim)
    assert jnp.allclose(out, ref_fn(x), atol=1e-5), "mismatch vs reference (B=64)"

    # 2) Large evaluation batch: exercises the tiled / padded multi-step path.
    batch2 = 1100
    x2 = jax.random.normal(kx2, (batch2, state_dim), dtype=jnp.float32)
    out2 = jax.block_until_ready(qnet_forward(x2, w1, b1, w2, b2, block_b=512))
    assert out2.shape == (batch2, action_dim)
    assert jnp.allclose(out2, ref_fn(x2), atol=1e-5), "mismatch vs reference (B=1100)"

    print("KERNEL_OK")
</pallas_src>

<mosaic_0001>
module attributes {stable_mosaic.version = 11 : i64} {
  func.func @qnet_kernel(%arg0: i32, %arg1: memref<64x4xf32, #tpu.memory_space<vmem>>, %arg2: memref<4x128xf32, #tpu.memory_space<vmem>>, %arg3: memref<1x128xf32, #tpu.memory_space<vmem>>, %arg4: memref<128x2xf32, #tpu.memory_space<vmem>>, %arg5: memref<1x2xf32, #tpu.memory_space<vmem>>, %arg6: memref<64x2xf32, #tpu.memory_space<vmem>>) attributes {dimension_semantics = [#tpu.dimension_semantics<parallel>], iteration_bounds = array<i64: 1>, scalar_prefetch = 0 : i64, scratch_operands = 0 : i64, tpu.core_type = #tpu.core_type<tc>, window_params = [{transform_indices = @transform_0, window_bounds = array<i64: 64, 4>}, {pipeline_mode = #tpu.pipeline_mode<synchronous>, transform_indices = @transform_1, window_bounds = array<i64: 4, 128>}, {pipeline_mode = #tpu.pipeline_mode<synchronous>, transform_indices = @transform_2, window_bounds = array<i64: 1, 128>}, {pipeline_mode = #tpu.pipeline_mode<synchronous>, transform_indices = @transform_3, window_bounds = array<i64: 128, 2>}, {pipeline_mode = #tpu.pipeline_mode<synchronous>, transform_indices = @transform_4, window_bounds = array<i64: 1, 2>}, {transform_indices = @transform_5, window_bounds = array<i64: 64, 2>}]} {
    %c0 = arith.constant 0 : index
    %c0_0 = arith.constant 0 : index
    %0 = vector.load %arg1[%c0, %c0_0] : memref<64x4xf32, #tpu.memory_space<vmem>>, vector<64x4xf32>
    %c0_1 = arith.constant 0 : index
    %c0_2 = arith.constant 0 : index
    %1 = vector.load %arg2[%c0_1, %c0_2] : memref<4x128xf32, #tpu.memory_space<vmem>>, vector<4x128xf32>
    %2 = vector.extract_strided_slice %0 {offsets = [0, 0], sizes = [64, 1], strides = [1, 1]} : vector<64x4xf32> to vector<64x1xf32>
    %3 = vector.extract_strided_slice %1 {offsets = [0, 0], sizes = [1, 128], strides = [1, 1]} : vector<4x128xf32> to vector<1x128xf32>
    %4 = vector.broadcast %2 : vector<64x1xf32> to vector<64x128xf32>
    %5 = vector.broadcast %3 : vector<1x128xf32> to vector<64x128xf32>
    %6 = arith.mulf %4, %5 : vector<64x128xf32>
    %7 = vector.extract_strided_slice %0 {offsets = [0, 1], sizes = [64, 1], strides = [1, 1]} : vector<64x4xf32> to vector<64x1xf32>
    %8 = vector.extract_strided_slice %1 {offsets = [1, 0], sizes = [1, 128], strides = [1, 1]} : vector<4x128xf32> to vector<1x128xf32>
    %9 = vector.broadcast %7 : vector<64x1xf32> to vector<64x128xf32>
    %10 = vector.broadcast %8 : vector<1x128xf32> to vector<64x128xf32>
    %11 = arith.mulf %9, %10 : vector<64x128xf32>
    %12 = arith.addf %6, %11 : vector<64x128xf32>
    %13 = vector.extract_strided_slice %0 {offsets = [0, 2], sizes = [64, 1], strides = [1, 1]} : vector<64x4xf32> to vector<64x1xf32>
    %14 = vector.extract_strided_slice %1 {offsets = [2, 0], sizes = [1, 128], strides = [1, 1]} : vector<4x128xf32> to vector<1x128xf32>
    %15 = vector.broadcast %13 : vector<64x1xf32> to vector<64x128xf32>
    %16 = vector.broadcast %14 : vector<1x128xf32> to vector<64x128xf32>
    %17 = arith.mulf %15, %16 : vector<64x128xf32>
    %18 = arith.addf %12, %17 : vector<64x128xf32>
    %19 = vector.extract_strided_slice %0 {offsets = [0, 3], sizes = [64, 1], strides = [1, 1]} : vector<64x4xf32> to vector<64x1xf32>
    %20 = vector.extract_strided_slice %1 {offsets = [3, 0], sizes = [1, 128], strides = [1, 1]} : vector<4x128xf32> to vector<1x128xf32>
    %21 = vector.broadcast %19 : vector<64x1xf32> to vector<64x128xf32>
    %22 = vector.broadcast %20 : vector<1x128xf32> to vector<64x128xf32>
    %23 = arith.mulf %21, %22 : vector<64x128xf32>
    %24 = arith.addf %18, %23 : vector<64x128xf32>
    %c0_3 = arith.constant 0 : index
    %c0_4 = arith.constant 0 : index
    %25 = vector.load %arg3[%c0_3, %c0_4] : memref<1x128xf32, #tpu.memory_space<vmem>>, vector<1x128xf32>
    %26 = vector.broadcast %25 : vector<1x128xf32> to vector<64x128xf32>
    %27 = arith.addf %24, %26 : vector<64x128xf32>
    %cst = arith.constant 0.000000e+00 : f32
    %28 = vector.broadcast %cst : f32 to vector<64x128xf32>
    %29 = arith.maximumf %27, %28 : vector<64x128xf32>
    %c0_5 = arith.constant 0 : index
    %c0_6 = arith.constant 0 : index
    %30 = vector.load %arg4[%c0_5, %c0_6] : memref<128x2xf32, #tpu.memory_space<vmem>>, vector<128x2xf32>
    %cst_7 = arith.constant dense<0.000000e+00> : vector<64x2xf32>
    %31 = tpu.matmul %29, %30, %cst_7 {dimension_numbers = #tpu.dot_dimension_numbers<[1], [0], [0], [1], [0, 0, 1, 1], [], []>} : vector<64x128xf32>, vector<128x2xf32>, vector<64x2xf32> -> vector<64x2xf32>
    %c0_8 = arith.constant 0 : index
    %c0_9 = arith.constant 0 : index
    %32 = vector.load %arg5[%c0_8, %c0_9] : memref<1x2xf32, #tpu.memory_space<vmem>>, vector<1x2xf32>
    %33 = vector.broadcast %32 : vector<1x2xf32> to vector<64x2xf32>
    %34 = arith.addf %31, %33 : vector<64x2xf32>
    %c0_10 = arith.constant 0 : index
    %c0_11 = arith.constant 0 : index
    %35 = vector.load %arg6[%c0_10, %c0_11] : memref<64x2xf32, #tpu.memory_space<vmem>>, vector<64x2xf32>
    tpu.vector_store %arg6[%c0_10, %c0_11], %34 {strides = array<i32>} : memref<64x2xf32, #tpu.memory_space<vmem>>, vector<64x2xf32>,
    return
  }
  func.func @transform_0(%arg0: i32) -> (i32, i32) {
    %c0_i32 = arith.constant 0 : i32
    %c0_i32_0 = arith.constant 0 : i32
    return %arg0, %c0_i32 : i32, i32
  }
  func.func @transform_1(%arg0: i32) -> (i32, i32) {
    %c0_i32 = arith.constant 0 : i32
    %c0_i32_0 = arith.constant 0 : i32
    %c0_i32_1 = arith.constant 0 : i32
    return %c0_i32, %c0_i32_0 : i32, i32
  }
  func.func @transform_2(%arg0: i32) -> (i32, i32) {
    %c0_i32 = arith.constant 0 : i32
    %c0_i32_0 = arith.constant 0 : i32
    %c0_i32_1 = arith.constant 0 : i32
    return %c0_i32, %c0_i32_0 : i32, i32
  }
  func.func @transform_3(%arg0: i32) -> (i32, i32) {
    %c0_i32 = arith.constant 0 : i32
    %c0_i32_0 = arith.constant 0 : i32
    %c0_i32_1 = arith.constant 0 : i32
    return %c0_i32, %c0_i32_0 : i32, i32
  }
  func.func @transform_4(%arg0: i32) -> (i32, i32) {
    %c0_i32 = arith.constant 0 : i32
    %c0_i32_0 = arith.constant 0 : i32
    %c0_i32_1 = arith.constant 0 : i32
    return %c0_i32, %c0_i32_0 : i32, i32
  }
  func.func @transform_5(%arg0: i32) -> (i32, i32) {
    %c0_i32 = arith.constant 0 : i32
    %c0_i32_0 = arith.constant 0 : i32
    return %arg0, %c0_i32 : i32, i32
  }
}

</mosaic_0001>

<llo_original>
// kernel: tpu_custom_call.1
$region0: #{tpu_custom_call.1}
  #allocation0 [shape = 'u32[]', space=smem, size = 0x4, offset = 0x4, fixed_abs, tag = 'smem constant byte address 0x4 - core index']
  #allocation1 [shape = 'u32[144,128]{1,0:T(1,128)}', space=vmem, size = 0x12000, scoped, tag = 'internal scratch']
  %s0 = inlined_call_operand.vmem [shape: f32[64,4], index: 0, kind: input, shape index: {}]
  %s1 = inlined_call_operand.vmem [shape: f32[4,128], index: 1, kind: input, shape index: {}]
  %s2 = inlined_call_operand.vmem [shape: f32[1,128], index: 2, kind: input, shape index: {}]
  %s3 = inlined_call_operand.vmem [shape: f32[128,2], index: 3, kind: input, shape index: {}]
  %s4 = inlined_call_operand.vmem [shape: f32[1,2], index: 4, kind: input, shape index: {}]
  %s5 = inlined_call_operand.vmem [shape: f32[64,2], index: 5, kind: output, shape index: {}]
  %s6 = sld [smem:[#allocation0]]
  $region30: #{tpu_custom_call.1} parent=0
    _
  %s8 = ssub.s32 1, %s6
  %s9 = scalar_select 0, %s8, %s6
  // Predicated region
  $region2: #{tpu_custom_call.1} parent=0 // pred_check
    _
  $region3: #{tpu_custom_call.1} parent=0 // pred_check_branch
    %11 = sbr.rel (0) target = $region5
  $region4: #{tpu_custom_call.1} parent=0 // pred_region
    _
  $region5: #{tpu_custom_call.1} parent=0 // pred_fallthru
    _
  // Predicated region
  $region6: #{tpu_custom_call.1} parent=0 // pred_check
    _
  $region7: #{tpu_custom_call.1} parent=0 // pred_check_branch
    %13 = sbr.rel (0) target = $region9
  $region8: #{tpu_custom_call.1} parent=0 // pred_region
    _
  $region9: #{tpu_custom_call.1} parent=0 // pred_fallthru
    _
  // Predicated region
  $region10: #{tpu_custom_call.1} parent=0 // pred_check
    _
  $region11: #{tpu_custom_call.1} parent=0 // pred_check_branch
    %15 = sbr.rel (0) target = $region13
  $region12: #{tpu_custom_call.1} parent=0 // pred_region
    _
  $region13: #{tpu_custom_call.1} parent=0 // pred_fallthru
    _
  // Predicated region
  $region14: #{tpu_custom_call.1} parent=0 // pred_check
    _
  $region15: #{tpu_custom_call.1} parent=0 // pred_check_branch
    %17 = sbr.rel (0) target = $region17
  $region16: #{tpu_custom_call.1} parent=0 // pred_region
    _
  $region17: #{tpu_custom_call.1} parent=0 // pred_fallthru
    _
  // Predicated region
  $region18: #{tpu_custom_call.1} parent=0 // pred_check
    _
  $region19: #{tpu_custom_call.1} parent=0 // pred_check_branch
    %19 = sbr.rel (0) target = $region21
  $region20: #{tpu_custom_call.1} parent=0 // pred_region
    _
  $region21: #{tpu_custom_call.1} parent=0 // pred_fallthru
    _
  %v20 = vld [vmem:[%s0] sm:$0xff]
  %v21 = vld [vmem:[%s0 + $0x8] sm:$0xff]
  %v22 = vld [vmem:[%s0 + $0x10] sm:$0xff]
  %v23 = vld [vmem:[%s0 + $0x18] sm:$0xff]
  %v24 = vld [vmem:[%s0 + $0x20] sm:$0xff]
  %v25 = vld [vmem:[%s0 + $0x28] sm:$0xff]
  %v26 = vld [vmem:[%s0 + $0x30] sm:$0xff]
  %v27 = vld [vmem:[%s0 + $0x38] sm:$0xff]
  %v28 = vld [vmem:[%s1] sm:$0xf]
  %30 = vset.pattern.permute.xlu0 0
  %31 = vperm.xlu0 %30, %v20
  %v32 = vpop.permute.xlu0 %31
  %35 = vset.pattern.permute.xlu0 0
  %36 = vperm.xlu0 %35, %v21
  %v37 = vpop.permute.xlu0 %36
  %40 = vset.pattern.permute.xlu0 0
  %41 = vperm.xlu0 %40, %v22
  %v42 = vpop.permute.xlu0 %41
  %45 = vset.pattern.permute.xlu0 0
  %46 = vperm.xlu0 %45, %v23
  %v47 = vpop.permute.xlu0 %46
  %50 = vset.pattern.permute.xlu0 0
  %51 = vperm.xlu0 %50, %v24
  %v52 = vpop.permute.xlu0 %51
  %55 = vset.pattern.permute.xlu0 0
  %56 = vperm.xlu0 %55, %v25
  %v57 = vpop.permute.xlu0 %56
  %60 = vset.pattern.permute.xlu0 0
  %61 = vperm.xlu0 %60, %v26
  %v62 = vpop.permute.xlu0 %61
  %65 = vset.pattern.permute.xlu0 0
  %66 = vperm.xlu0 %65, %v27
  %v67 = vpop.permute.xlu0 %66
  %v69 = vlaneseq
  %v70 = vshrl.u32 %v69, 7
  %v71 = vsub.s32 0, %v70
  %v72 = vrot.slane %v28, %v71
  %v73 = vmul.f32 %v32, %v72
  %v74 = vmul.f32 %v37, %v72
  %v75 = vmul.f32 %v42, %v72
  %v76 = vmul.f32 %v47, %v72
  %v77 = vmul.f32 %v52, %v72
  %v78 = vmul.f32 %v57, %v72
  %v79 = vmul.f32 %v62, %v72
  %v80 = vmul.f32 %v67, %v72
  %81 = vset.pattern.permute.xlu0 1
  %82 = vperm.xlu0 %81, %v20
  %v83 = vpop.permute.xlu0 %82
  %85 = vset.pattern.permute.xlu0 1
  %86 = vperm.xlu0 %85, %v21
  %v87 = vpop.permute.xlu0 %86
  %89 = vset.pattern.permute.xlu0 1
  %90 = vperm.xlu0 %89, %v22
  %v91 = vpop.permute.xlu0 %90
  %93 = vset.pattern.permute.xlu0 1
  %94 = vperm.xlu0 %93, %v23
  %v95 = vpop.permute.xlu0 %94
  %97 = vset.pattern.permute.xlu0 1
  %98 = vperm.xlu0 %97, %v24
  %v99 = vpop.permute.xlu0 %98
  %101 = vset.pattern.permute.xlu0 1
  %102 = vperm.xlu0 %101, %v25
  %v103 = vpop.permute.xlu0 %102
  %105 = vset.pattern.permute.xlu0 1
  %106 = vperm.xlu0 %105, %v26
  %v107 = vpop.permute.xlu0 %106
  %109 = vset.pattern.permute.xlu0 1
  %110 = vperm.xlu0 %109, %v27
  %v111 = vpop.permute.xlu0 %110
  %v113 = vlaneseq
  %v114 = vshrl.u32 %v113, 7
  %v115 = vsub.s32 1, %v114
  %v116 = vrot.slane %v28, %v115
  %v117 = vmul.f32 %v83, %v116
  %v118 = vmul.f32 %v87, %v116
  %v119 = vmul.f32 %v91, %v116
  %v120 = vmul.f32 %v95, %v116
  %v121 = vmul.f32 %v99, %v116
  %v122 = vmul.f32 %v103, %v116
  %v123 = vmul.f32 %v107, %v116
  %v124 = vmul.f32 %v111, %v116
  %v125 = vadd.f32 %v73, %v117
  %v126 = vadd.f32 %v74, %v118
  %v127 = vadd.f32 %v75, %v119
  %v128 = vadd.f32 %v76, %v120
  %v129 = vadd.f32 %v77, %v121
  %v130 = vadd.f32 %v78, %v122
  %v131 = vadd.f32 %v79, %v123
  %v132 = vadd.f32 %v80, %v124
  %133 = vset.pattern.permute.xlu0 2
  %134 = vperm.xlu0 %133, %v20
  %v135 = vpop.permute.xlu0 %134
  %137 = vset.pattern.permute.xlu0 2
  %138 = vperm.xlu0 %137, %v21
  %v139 = vpop.permute.xlu0 %138
  %141 = vset.pattern.permute.xlu0 2
  %142 = vperm.xlu0 %141, %v22
  %v143 = vpop.permute.xlu0 %142
  %145 = vset.pattern.permute.xlu0 2
  %146 = vperm.xlu0 %145, %v23
  %v147 = vpop.permute.xlu0 %146
  %149 = vset.pattern.permute.xlu0 2
  %150 = vperm.xlu0 %149, %v24
  %v151 = vpop.permute.xlu0 %150
  %153 = vset.pattern.permute.xlu0 2
  %154 = vperm.xlu0 %153, %v25
  %v155 = vpop.permute.xlu0 %154
  %157 = vset.pattern.permute.xlu0 2
  %158 = vperm.xlu0 %157, %v26
  %v159 = vpop.permute.xlu0 %158
  %161 = vset.pattern.permute.xlu0 2
  %162 = vperm.xlu0 %161, %v27
  %v163 = vpop.permute.xlu0 %162
  %v165 = vlaneseq
  %v166 = vshrl.u32 %v165, 7
  %v167 = vsub.s32 2, %v166
  %v168 = vrot.slane %v28, %v167
  %v169 = vmul.f32 %v135, %v168
  %v170 = vmul.f32 %v139, %v168
  %v171 = vmul.f32 %v143, %v168
  %v172 = vmul.f32 %v147, %v168
  %v173 = vmul.f32 %v151, %v168
  %v174 = vmul.f32 %v155, %v168
  %v175 = vmul.f32 %v159, %v168
  %v176 = vmul.f32 %v163, %v168
  %v177 = vadd.f32 %v125, %v169
  %v178 = vadd.f32 %v126, %v170
  %v179 = vadd.f32 %v127, %v171
  %v180 = vadd.f32 %v128, %v172
  %v181 = vadd.f32 %v129, %v173
  %v182 = vadd.f32 %v130, %v174
  %v183 = vadd.f32 %v131, %v175
  %v184 = vadd.f32 %v132, %v176
  %185 = vset.pattern.permute.xlu0 3
  %186 = vperm.xlu0 %185, %v20
  %v187 = vpop.permute.xlu0 %186
  %189 = vset.pattern.permute.xlu0 3
  %190 = vperm.xlu0 %189, %v21
  %v191 = vpop.permute.xlu0 %190
  %193 = vset.pattern.permute.xlu0 3
  %194 = vperm.xlu0 %193, %v22
  %v195 = vpop.permute.xlu0 %194
  %197 = vset.pattern.permute.xlu0 3
  %198 = vperm.xlu0 %197, %v23
  %v199 = vpop.permute.xlu0 %198
  %201 = vset.pattern.permute.xlu0 3
  %202 = vperm.xlu0 %201, %v24
  %v203 = vpop.permute.xlu0 %202
  %205 = vset.pattern.permute.xlu0 3
  %206 = vperm.xlu0 %205, %v25
  %v207 = vpop.permute.xlu0 %206
  %209 = vset.pattern.permute.xlu0 3
  %210 = vperm.xlu0 %209, %v26
  %v211 = vpop.permute.xlu0 %210
  %213 = vset.pattern.permute.xlu0 3
  %214 = vperm.xlu0 %213, %v27
  %v215 = vpop.permute.xlu0 %214
  %v217 = vlaneseq
  %v218 = vshrl.u32 %v217, 7
  %v219 = vsub.s32 3, %v218
  %v220 = vrot.slane %v28, %v219
  %v221 = vmul.f32 %v187, %v220
  %v222 = vmul.f32 %v191, %v220
  %v223 = vmul.f32 %v195, %v220
  %v224 = vmul.f32 %v199, %v220
  %v225 = vmul.f32 %v203, %v220
  %v226 = vmul.f32 %v207, %v220
  %v227 = vmul.f32 %v211, %v220
  %v228 = vmul.f32 %v215, %v220
  %v229 = vadd.f32 %v177, %v221
  %v230 = vadd.f32 %v178, %v222
  %v231 = vadd.f32 %v179, %v223
  %v232 = vadd.f32 %v180, %v224
  %v233 = vadd.f32 %v181, %v225
  %v234 = vadd.f32 %v182, %v226
  %v235 = vadd.f32 %v183, %v227
  %v236 = vadd.f32 %v184, %v228
  %v237 = vld [vmem:[%s2] sm:$0x1]
  %v239 = vlaneseq
  %v240 = vshrl.u32 %v239, 7
  %v241 = vsub.s32 0, %v240
  %v242 = vrot.slane %v237, %v241
  %v244 = vadd.f32 %v229, %v242
  %v245 = vadd.f32 %v230, %v242
  %v246 = vadd.f32 %v231, %v242
  %v247 = vadd.f32 %v232, %v242
  %v248 = vadd.f32 %v233, %v242
  %v249 = vadd.f32 %v234, %v242
  %v250 = vadd.f32 %v235, %v242
  %v251 = vadd.f32 %v236, %v242
  %v252 = vmax.f32 %v244, 0.0
  %v253 = vmax.f32 %v245, 0.0
  %v254 = vmax.f32 %v246, 0.0
  %v255 = vmax.f32 %v247, 0.0
  %v256 = vmax.f32 %v248, 0.0
  %v257 = vmax.f32 %v249, 0.0
  %v258 = vmax.f32 %v250, 0.0
  %v259 = vmax.f32 %v251, 0.0
  %v260 = vld [vmem:[%s3] sm:$0xff]
  %v261 = vld [vmem:[%s3 + $0x8] sm:$0xff]
  %v262 = vld [vmem:[%s3 + $0x10] sm:$0xff]
  %v263 = vld [vmem:[%s3 + $0x18] sm:$0xff]
  %v264 = vld [vmem:[%s3 + $0x20] sm:$0xff]
  %v265 = vld [vmem:[%s3 + $0x28] sm:$0xff]
  %v266 = vld [vmem:[%s3 + $0x30] sm:$0xff]
  %v267 = vld [vmem:[%s3 + $0x38] sm:$0xff]
  %v268 = vld [vmem:[%s3 + $0x40] sm:$0xff]
  %v269 = vld [vmem:[%s3 + $0x48] sm:$0xff]
  %v270 = vld [vmem:[%s3 + $0x50] sm:$0xff]
  %v271 = vld [vmem:[%s3 + $0x58] sm:$0xff]
  %v272 = vld [vmem:[%s3 + $0x60] sm:$0xff]
  %v273 = vld [vmem:[%s3 + $0x68] sm:$0xff]
  %v274 = vld [vmem:[%s3 + $0x70] sm:$0xff]
  %v275 = vld [vmem:[%s3 + $0x78] sm:$0xff]
  %v276 = vld [vmem:[%s4] sm:$0x1]
  %v278 = vlaneseq
  %v279 = vshrl.u32 %v278, 7
  %v280 = vsub.s32 0, %v279
  %v281 = vrot.slane %v276, %v280
  %283 = vmatprep.subr.mxu0 0.0
  %284 = vmatpush1.msra.mxu0 %v260
  %285 = vmatprep.subr.mxu0 0.0
  %286 = vmatpush1.msra.mxu0 %v261
  %287 = vmatprep.subr.mxu0 0.0
  %288 = vmatpush1.msra.mxu0 %v262
  %289 = vmatprep.subr.mxu0 0.0
  %290 = vmatpush1.msra.mxu0 %v263
  %291 = vmatprep.subr.mxu0 0.0
  %292 = vmatpush1.msra.mxu0 %v264
  %293 = vmatprep.subr.mxu0 0.0
  %294 = vmatpush1.msra.mxu0 %v265
  %295 = vmatprep.subr.mxu0 0.0
  %296 = vmatpush1.msra.mxu0 %v266
  %297 = vmatprep.subr.mxu0 0.0
  %298 = vmatpush1.msra.mxu0 %v267
  %299 = vmatprep.subr.mxu0 0.0
  %300 = vmatpush1.msra.mxu0 %v268
  %301 = vmatprep.subr.mxu0 0.0
  %302 = vmatpush1.msra.mxu0 %v269
  %303 = vmatprep.subr.mxu0 0.0
  %304 = vmatpush1.msra.mxu0 %v270
  %305 = vmatprep.subr.mxu0 0.0
  %306 = vmatpush1.msra.mxu0 %v271
  %307 = vmatprep.subr.mxu0 0.0
  %308 = vmatpush1.msra.mxu0 %v272
  %309 = vmatprep.subr.mxu0 0.0
  %310 = vmatpush1.msra.mxu0 %v273
  %311 = vmatprep.subr.mxu0 0.0
  %312 = vmatpush1.msra.mxu0 %v274
  %313 = vmatprep.subr.mxu0 0.0
  %314 = vmatpush1.msra.mxu0 %v275
  %315 = vmatprep.subr.mxu0 0.0
  %316 = vmatpush1.msra.mxu0 0.0
  %317 = vmatprep.subr.mxu0 0.0
  %318 = vmatpush1.msra.mxu0 0.0
  %319 = vmatprep.subr.mxu0 0.0
  %320 = vmatpush1.msra.mxu0 0.0
  %321 = vmatprep.subr.mxu0 0.0
  %322 = vmatpush1.msra.mxu0 0.0
  %323 = vmatprep.subr.mxu0 0.0
  %324 = vmatpush1.msra.mxu0 0.0
  %325 = vmatprep.subr.mxu0 0.0
  %326 = vmatpush1.msra.mxu0 0.0
  %327 = vmatprep.subr.mxu0 0.0
  %328 = vmatpush1.msra.mxu0 0.0
  %329 = vmatprep.subr.mxu0 0.0
  %330 = vmatpush1.msra.mxu0 0.0
  %331 = vmatprep.subr.mxu0 0.0
  %332 = vmatpush1.msra.mxu0 0.0
  %333 = vmatprep.subr.mxu0 0.0
  %334 = vmatpush1.msra.mxu0 0.0
  %335 = vmatprep.subr.mxu0 0.0
  %336 = vmatpush1.msra.mxu0 0.0
  %337 = vmatprep.subr.mxu0 0.0
  %338 = vmatpush1.msra.mxu0 0.0
  %339 = vmatprep.subr.mxu0 0.0
  %340 = vmatpush1.msra.mxu0 0.0
  %341 = vmatprep.subr.mxu0 0.0
  %342 = vmatpush1.msra.mxu0 0.0
  %343 = vmatprep.subr.mxu0 0.0
  %344 = vmatpush1.msra.mxu0 0.0
  %345 = vmatprep.subr.mxu0 0.0
  %346 = vmatpush1.msra.mxu0 0.0
  %347 = vmatprep.mubr.f32.mxu0 0.0
  %348 = vmatmul.mubr.f32.gmra.mrb[0].mxu0 %v252
  %v349 = vpop.f32.mrb[0].mxu0
  %v350 = vadd.f32 %v281, %v349
  %v351 = vpop.f32.mrb[0].mxu0
  %352 = vmatprep.mubr.f32.mxu0 0.0
  %353 = vmatmul.mubr.f32.gmra.mrb[0].mxu0 %v253
  %v354 = vpop.f32.mrb[0].mxu0
  %v355 = vadd.f32 %v281, %v354
  %v356 = vpop.f32.mrb[0].mxu0
  %357 = vmatprep.mubr.f32.mxu0 0.0
  %358 = vmatmul.mubr.f32.gmra.mrb[0].mxu0 %v254
  %v359 = vpop.f32.mrb[0].mxu0
  %v360 = vadd.f32 %v281, %v359
  %v361 = vpop.f32.mrb[0].mxu0
  %362 = vmatprep.mubr.f32.mxu0 0.0
  %363 = vmatmul.mubr.f32.gmra.mrb[0].mxu0 %v255
  %v364 = vpop.f32.mrb[0].mxu0
  %v365 = vadd.f32 %v281, %v364
  %v366 = vpop.f32.mrb[0].mxu0
  %367 = vmatprep.mubr.f32.mxu0 0.0
  %368 = vmatmul.mubr.f32.gmra.mrb[0].mxu0 %v256
  %v369 = vpop.f32.mrb[0].mxu0
  %v370 = vadd.f32 %v281, %v369
  %v371 = vpop.f32.mrb[0].mxu0
  %372 = vmatprep.mubr.f32.mxu0 0.0
  %373 = vmatmul.mubr.f32.gmra.mrb[0].mxu0 %v257
  %v374 = vpop.f32.mrb[0].mxu0
  %v375 = vadd.f32 %v281, %v374
  %v376 = vpop.f32.mrb[0].mxu0
  %377 = vmatprep.mubr.f32.mxu0 0.0
  %378 = vmatmul.mubr.f32.gmra.mrb[0].mxu0 %v258
  %v379 = vpop.f32.mrb[0].mxu0
  %v380 = vadd.f32 %v281, %v379
  %v381 = vpop.f32.mrb[0].mxu0
  %382 = vmatprep.mubr.f32.mxu0 0.0
  %383 = vmatmul.mubr.f32.gmra.mrb[0].mxu0 %v259
  %v384 = vpop.f32.mrb[0].mxu0
  %v385 = vadd.f32 %v281, %v384
  %v386 = vpop.f32.mrb[0].mxu0
  %387 = vdwg.mxu0
  %vm388 = vcmask 15360
  %389 = vst.msk [vmem:[%s5] sm:$0xff] %vm388, %v350
  %390 = vst.msk [vmem:[%s5 + $0x8] sm:$0xff] %vm388, %v355
  %391 = vst.msk [vmem:[%s5 + $0x10] sm:$0xff] %vm388, %v360
  %392 = vst.msk [vmem:[%s5 + $0x18] sm:$0xff] %vm388, %v365
  %393 = vst.msk [vmem:[%s5 + $0x20] sm:$0xff] %vm388, %v370
  %394 = vst.msk [vmem:[%s5 + $0x28] sm:$0xff] %vm388, %v375
  %395 = vst.msk [vmem:[%s5 + $0x30] sm:$0xff] %vm388, %v380
  %396 = vst.msk [vmem:[%s5 + $0x38] sm:$0xff] %vm388, %v385
  // Predicated region
  $region22: #{tpu_custom_call.1} parent=0 // pred_check
    _
  $region23: #{tpu_custom_call.1} parent=0 // pred_check_branch
    %398 = sbr.rel (0) target = $region25
  $region24: #{tpu_custom_call.1} parent=0 // pred_region
    _
  $region25: #{tpu_custom_call.1} parent=0 // pred_fallthru
    _
  // Predicated region
  $region26: #{tpu_custom_call.1} parent=0 // pred_check
    _
  $region27: #{tpu_custom_call.1} parent=0 // pred_check_branch
    %400 = sbr.rel (0) target = $region29
  $region28: #{tpu_custom_call.1} parent=0 // pred_region
    _
  $region29: #{tpu_custom_call.1} parent=0 // pred_fallthru
    _

</llo_original>
